<compile_context>
chip_gen: v6e
topology: v6e:2x2x1
jax: 0.10.0
libtpu: 0.0.40
codegen_flags: <defaults>
</compile_context>

<pallas_src>
import jax
import jax.numpy as jnp
from jax.experimental import pallas as pl
from jax.experimental.pallas import tpu as pltpu


def _decoder_kernel(x_ref, w1_ref, b1_ref, w2_ref, b2_ref, o_ref):
    # Input ReLU in f32, then cast the MXU operand to the (pre-cast) weight
    # dtype (bf16 weights -> bf16 MXU inputs; f32 weights -> pure f32 path).
    x = jnp.maximum(x_ref[...], 0.0).astype(w1_ref.dtype)
    # Hidden layer: [tm, in] @ [in, 256], f32 accumulation + f32 bias/ReLU.
    h = jnp.dot(x, w1_ref[...], preferred_element_type=jnp.float32) + b1_ref[...]
    h = jnp.maximum(h, 0.0).astype(w2_ref.dtype)
    # Output layer: [tm, 256] @ [256, out], f32 accumulation + f32 bias.
    y = jnp.dot(h, w2_ref[...], preferred_element_type=jnp.float32) + b2_ref[...]
    # Final ReLU, lane-dense store (out_f multiple of 128).
    o_ref[...] = jnp.maximum(y, 0.0).astype(o_ref.dtype)


def _round_up(x, m):
    return ((x + m - 1) // m) * m


# VMEM budget for the double-buffered activation tiles only (weights ~80-160 KB
# are resident on top of this).  12 MiB keeps us inside v5e's 16 MiB scoped
# default and leaves ample headroom on v6e/v7x without touching vmem_limit_bytes.
_ACT_TILE_VMEM_BUDGET = 12 * 1024 * 1024


def decoder_forward(code, w1_t, b1, w2_t, b2, *, tm=None, num_cores=1,
                    out_dtype=jnp.float32):
    """Fused Decoder forward pass as a single Pallas kernel.

    code : [B, input_shape]    f32 (or bf16)
    w1_t : [input_shape, 256]  transpose of PyTorch weight, pre-cast (bf16 or f32)
    b1   : [256] or [1, 256]   f32
    w2_t : [256, output_shape] transpose of PyTorch weight, pre-cast (bf16 or f32)
    b2   : [output_shape] or [1, output_shape] f32
    num_cores : 1 for v5e/v6e (single TensorCore -> collapse to one grid step
                when the batch fits); 2 on v7x so both TCs get a balanced tile.
    returns [B, output_shape] in `out_dtype` (f32 default; bf16 halves the
    largest HBM stream if downstream allows).
    """
    B, in_f = code.shape
    hid = w1_t.shape[1]
    out_f = w2_t.shape[1]
    assert w1_t.shape[0] == in_f and w2_t.shape[0] == hid

    # Biases must be (1, N) rows for the 2-D BlockSpecs below.
    b1 = b1.reshape(1, hid).astype(jnp.float32)
    b2 = b2.reshape(1, out_f).astype(jnp.float32)

    in_bytes = jnp.dtype(code.dtype).itemsize
    o_bytes = jnp.dtype(out_dtype).itemsize
    w_bytes = jnp.dtype(w1_t.dtype).itemsize

    if tm is None:
        # Largest batch tile whose double-buffered in/out tiles fit the budget:
        # ~2 * (in_f + out_f) bytes per row.
        per_row = 2 * (in_f * in_bytes + out_f * o_bytes)
        tm_cap = max(8, (_ACT_TILE_VMEM_BUDGET // per_row) // 8 * 8)
        # Balanced tiles so multi-TC chips (v7x) split the "parallel" grid axis;
        # num_cores=1 makes this the whole batch (single step on v5e/v6e).
        tm_target = _round_up(pl.cdiv(B, max(1, num_cores)), 8)
        tm = min(tm_cap, tm_target)
    if tm >= B:
        tm = B                       # block == full batch dim: one grid step
    else:
        tm = max(8, (tm // 8) * 8)   # second-to-last dim must be 8-aligned
    grid_b = pl.cdiv(B, tm)

    flops = 2 * B * (in_f * hid + hid * out_f)
    bytes_accessed = (
        B * in_f * in_bytes          # code
        + in_f * hid * w_bytes       # w1
        + hid * 4                    # b1
        + hid * out_f * w_bytes      # w2
        + out_f * 4                  # b2
        + B * out_f * o_bytes        # output
    )

    return pl.pallas_call(
        _decoder_kernel,
        out_shape=jax.ShapeDtypeStruct((B, out_f), out_dtype),
        grid_spec=pl.GridSpec(
            grid=(grid_b,),
            in_specs=[
                # Activations: tiled over the batch (software pipelined).
                pl.BlockSpec((tm, in_f), lambda i: (i, 0)),
                # Weights / biases: constant index_map -> resident in VMEM.
                pl.BlockSpec((in_f, hid), lambda i: (0, 0)),
                pl.BlockSpec((1, hid), lambda i: (0, 0)),
                pl.BlockSpec((hid, out_f), lambda i: (0, 0)),
                pl.BlockSpec((1, out_f), lambda i: (0, 0)),
            ],
            out_specs=pl.BlockSpec((tm, out_f), lambda i: (i, 0)),
        ),
        compiler_params=pltpu.CompilerParams(
            # Batch tiles are independent -> shard across v7x's 2 TensorCores.
            dimension_semantics=("parallel",),
        ),
        cost_estimate=pl.CostEstimate(
            flops=flops, transcendentals=0, bytes_accessed=bytes_accessed
        ),
    )(code, w1_t, b1, w2_t, b2)


def reference_forward(code, w1_t, b1, w2_t, b2):
    # Pure f32 reference (matches the PyTorch module semantics).
    x = jnp.maximum(code, 0.0)
    h = jnp.maximum(x @ w1_t + b1, 0.0)
    return jnp.maximum(h @ w2_t + b2, 0.0)


if __name__ == "__main__":
    # Shapes consistent with the module: Decoder(input_shape=32, output_shape=128).
    B, IN_F, HID, OUT_F = 512, 32, 256, 128

    key = jax.random.PRNGKey(0)
    k_code, k_w1, k_b1, k_w2, k_b2 = jax.random.split(key, 5)

    code = jax.random.normal(k_code, (B, IN_F), dtype=jnp.float32)
    # PyTorch weight shapes would be W1: [256, IN_F], W2: [OUT_F, 256]; we store
    # the transposes directly and pre-cast them to bf16 ONCE at parameter setup
    # (no per-call cast inside the wrapper).
    w1_t_f32 = jax.random.normal(k_w1, (IN_F, HID), dtype=jnp.float32) * 0.05
    w2_t_f32 = jax.random.normal(k_w2, (HID, OUT_F), dtype=jnp.float32) * 0.05
    b1 = jax.random.normal(k_b1, (HID,), dtype=jnp.float32) * 0.05
    b2 = jax.random.normal(k_b2, (OUT_F,), dtype=jnp.float32) * 0.05
    w1_t = w1_t_f32.astype(jnp.bfloat16)
    w2_t = w2_t_f32.astype(jnp.bfloat16)

    ref = reference_forward(code, w1_t_f32, b1.reshape(1, -1),
                            w2_t_f32, b2.reshape(1, -1))

    # Default (num_cores=1): whole batch fits the VMEM budget -> single grid
    # step (best on single-TC v5e/v6e).
    out1 = jax.block_until_ready(decoder_forward(code, w1_t, b1, w2_t, b2))
    # v7x-style: two balanced "parallel" tiles so both TensorCores get work.
    out2 = jax.block_until_ready(
        decoder_forward(code, w1_t, b1, w2_t, b2, num_cores=2))

    assert out1.shape == (B, OUT_F)
    assert out2.shape == (B, OUT_F)
    # bf16 MXU inputs with f32 accumulation -> loosened tolerance vs f32 ref.
    # (Pass f32 weights for exact parity; it costs nothing on this mem-bound op.)
    assert jnp.allclose(out1, ref, atol=3e-2, rtol=3e-2), "mismatch vs reference"
    assert jnp.allclose(out2, ref, atol=3e-2, rtol=3e-2), "mismatch vs reference"

    print("KERNEL_OK")
</pallas_src>

<mosaic_0001>
module attributes {stable_mosaic.version = 11 : i64} {
  func.func @_decoder_kernel(%arg0: i32, %arg1: memref<512x32xf32, #tpu.memory_space<vmem>>, %arg2: memref<32x256xbf16, #tpu.memory_space<vmem>>, %arg3: memref<1x256xf32, #tpu.memory_space<vmem>>, %arg4: memref<256x128xbf16, #tpu.memory_space<vmem>>, %arg5: memref<1x128xf32, #tpu.memory_space<vmem>>, %arg6: memref<512x128xf32, #tpu.memory_space<vmem>>) attributes {dimension_semantics = [#tpu.dimension_semantics<parallel>], iteration_bounds = array<i64: 1>, scalar_prefetch = 0 : i64, scratch_operands = 0 : i64, tpu.core_type = #tpu.core_type<tc>, window_params = [{transform_indices = @transform_0, window_bounds = array<i64: 512, 32>}, {pipeline_mode = #tpu.pipeline_mode<synchronous>, transform_indices = @transform_1, window_bounds = array<i64: 32, 256>}, {pipeline_mode = #tpu.pipeline_mode<synchronous>, transform_indices = @transform_2, window_bounds = array<i64: 1, 256>}, {pipeline_mode = #tpu.pipeline_mode<synchronous>, transform_indices = @transform_3, window_bounds = array<i64: 256, 128>}, {pipeline_mode = #tpu.pipeline_mode<synchronous>, transform_indices = @transform_4, window_bounds = array<i64: 1, 128>}, {transform_indices = @transform_5, window_bounds = array<i64: 512, 128>}]} {
    %c0 = arith.constant 0 : index
    %c0_0 = arith.constant 0 : index
    %0 = vector.load %arg1[%c0, %c0_0] : memref<512x32xf32, #tpu.memory_space<vmem>>, vector<512x32xf32>
    %cst = arith.constant 0.000000e+00 : f32
    %1 = vector.broadcast %cst : f32 to vector<512x32xf32>
    %2 = arith.maximumf %0, %1 : vector<512x32xf32>
    %3 = arith.truncf %2 : vector<512x32xf32> to vector<512x32xbf16>
    %c0_1 = arith.constant 0 : index
    %c0_2 = arith.constant 0 : index
    %4 = vector.load %arg2[%c0_1, %c0_2] : memref<32x256xbf16, #tpu.memory_space<vmem>>, vector<32x256xbf16>
    %cst_3 = arith.constant dense<0.000000e+00> : vector<512x256xf32>
    %5 = tpu.matmul %3, %4, %cst_3 {dimension_numbers = #tpu.dot_dimension_numbers<[1], [0], [0], [1], [0, 0, 1, 1], [], []>} : vector<512x32xbf16>, vector<32x256xbf16>, vector<512x256xf32> -> vector<512x256xf32>
    %c0_4 = arith.constant 0 : index
    %c0_5 = arith.constant 0 : index
    %6 = vector.load %arg3[%c0_4, %c0_5] : memref<1x256xf32, #tpu.memory_space<vmem>>, vector<1x256xf32>
    %7 = vector.broadcast %6 : vector<1x256xf32> to vector<512x256xf32>
    %8 = arith.addf %5, %7 : vector<512x256xf32>
    %cst_6 = arith.constant 0.000000e+00 : f32
    %9 = vector.broadcast %cst_6 : f32 to vector<512x256xf32>
    %10 = arith.maximumf %8, %9 : vector<512x256xf32>
    %11 = arith.truncf %10 : vector<512x256xf32> to vector<512x256xbf16>
    %c0_7 = arith.constant 0 : index
    %c0_8 = arith.constant 0 : index
    %12 = vector.load %arg4[%c0_7, %c0_8] : memref<256x128xbf16, #tpu.memory_space<vmem>>, vector<256x128xbf16>
    %cst_9 = arith.constant dense<0.000000e+00> : vector<512x128xf32>
    %13 = tpu.matmul %11, %12, %cst_9 {dimension_numbers = #tpu.dot_dimension_numbers<[1], [0], [0], [1], [0, 0, 1, 1], [], []>} : vector<512x256xbf16>, vector<256x128xbf16>, vector<512x128xf32> -> vector<512x128xf32>
    %c0_10 = arith.constant 0 : index
    %c0_11 = arith.constant 0 : index
    %14 = vector.load %arg5[%c0_10, %c0_11] : memref<1x128xf32, #tpu.memory_space<vmem>>, vector<1x128xf32>
    %15 = vector.broadcast %14 : vector<1x128xf32> to vector<512x128xf32>
    %16 = arith.addf %13, %15 : vector<512x128xf32>
    %cst_12 = arith.constant 0.000000e+00 : f32
    %17 = vector.broadcast %cst_12 : f32 to vector<512x128xf32>
    %18 = arith.maximumf %16, %17 : vector<512x128xf32>
    %c0_13 = arith.constant 0 : index
    %c0_14 = arith.constant 0 : index
    %19 = vector.load %arg6[%c0_13, %c0_14] : memref<512x128xf32, #tpu.memory_space<vmem>>, vector<512x128xf32>
    tpu.vector_store %arg6[%c0_13, %c0_14], %18 {strides = array<i32>} : memref<512x128xf32, #tpu.memory_space<vmem>>, vector<512x128xf32>,
    return
  }
  func.func @transform_0(%arg0: i32) -> (i32, i32) {
    %c0_i32 = arith.constant 0 : i32
    %c0_i32_0 = arith.constant 0 : i32
    return %arg0, %c0_i32 : i32, i32
  }
  func.func @transform_1(%arg0: i32) -> (i32, i32) {
    %c0_i32 = arith.constant 0 : i32
    %c0_i32_0 = arith.constant 0 : i32
    %c0_i32_1 = arith.constant 0 : i32
    return %c0_i32, %c0_i32_0 : i32, i32
  }
  func.func @transform_2(%arg0: i32) -> (i32, i32) {
    %c0_i32 = arith.constant 0 : i32
    %c0_i32_0 = arith.constant 0 : i32
    %c0_i32_1 = arith.constant 0 : i32
    return %c0_i32, %c0_i32_0 : i32, i32
  }
  func.func @transform_3(%arg0: i32) -> (i32, i32) {
    %c0_i32 = arith.constant 0 : i32
    %c0_i32_0 = arith.constant 0 : i32
    %c0_i32_1 = arith.constant 0 : i32
    return %c0_i32, %c0_i32_0 : i32, i32
  }
  func.func @transform_4(%arg0: i32) -> (i32, i32) {
    %c0_i32 = arith.constant 0 : i32
    %c0_i32_0 = arith.constant 0 : i32
    %c0_i32_1 = arith.constant 0 : i32
    return %c0_i32, %c0_i32_0 : i32, i32
  }
  func.func @transform_5(%arg0: i32) -> (i32, i32) {
    %c0_i32 = arith.constant 0 : i32
    %c0_i32_0 = arith.constant 0 : i32
    return %arg0, %c0_i32 : i32, i32
  }
}

</mosaic_0001>

<llo_original>
// kernel: tpu_custom_call.1
$region0: #{tpu_custom_call.1}
  #allocation0 [shape = 'u32[]', space=smem, size = 0x4, offset = 0x4, fixed_abs, tag = 'smem constant byte address 0x4 - core index']
  #allocation1 [shape = 'u32[144,128]{1,0:T(1,128)}', space=vmem, size = 0x12000, scoped, tag = 'internal scratch']
  %s0 = inlined_call_operand.vmem [shape: f32[512,32], index: 0, kind: input, shape index: {}]
  %s1 = inlined_call_operand.vmem [shape: bf16[32,256], index: 1, kind: input, shape index: {}]
  %s2 = inlined_call_operand.vmem [shape: f32[1,256], index: 2, kind: input, shape index: {}]
  %s3 = inlined_call_operand.vmem [shape: bf16[256,128], index: 3, kind: input, shape index: {}]
  %s4 = inlined_call_operand.vmem [shape: f32[1,128], index: 4, kind: input, shape index: {}]
  %s5 = inlined_call_operand.hbm [shape: f32[512,128], index: 5, kind: output, shape index: {}]
  %s6 = sld [smem:[#allocation0]]
  $region30: #{tpu_custom_call.1} parent=0
    _
  %s8 = ssub.s32 1, %s6
  %s9 = scalar_select 0, %s8, %s6
  $region1: #{tpu_custom_call.1} parent=0
    #allocation2 [shape = 'u8[262144]{0}', space=vmem, size = 0x40000, scoped, tag = 'output window, operand 0, single buffered']
    #allocation3 [shape = 's32[1]{0}', space=sflag, size = 0x4, scoped, tag = 'scoped memory for tpu_custom_call.1']
    %10 = vsyncpa [#allocation3], 0
    // Predicated region
    $region2: #{tpu_custom_call.1} parent=1 // pred_check
      _
    $region3: #{tpu_custom_call.1} parent=1 // pred_check_branch
      %12 = sbr.rel (0) target = $region5
    $region4: #{tpu_custom_call.1} parent=1 // pred_region
      _
    $region5: #{tpu_custom_call.1} parent=1 // pred_fallthru
      _
    // Predicated region
    $region6: #{tpu_custom_call.1} parent=1 // pred_check
      _
    $region7: #{tpu_custom_call.1} parent=1 // pred_check_branch
      %14 = sbr.rel (0) target = $region9
    $region8: #{tpu_custom_call.1} parent=1 // pred_region
      _
    $region9: #{tpu_custom_call.1} parent=1 // pred_fallthru
      _
    // Predicated region
    $region10: #{tpu_custom_call.1} parent=1 // pred_check
      _
    $region11: #{tpu_custom_call.1} parent=1 // pred_check_branch
      %16 = sbr.rel (0) target = $region13
    $region12: #{tpu_custom_call.1} parent=1 // pred_region
      _
    $region13: #{tpu_custom_call.1} parent=1 // pred_fallthru
      _
    // Predicated region
    $region14: #{tpu_custom_call.1} parent=1 // pred_check
      _
    $region15: #{tpu_custom_call.1} parent=1 // pred_check_branch
      %18 = sbr.rel (0) target = $region17
    $region16: #{tpu_custom_call.1} parent=1 // pred_region
      _
    $region17: #{tpu_custom_call.1} parent=1 // pred_fallthru
      _
    // Predicated region
    $region18: #{tpu_custom_call.1} parent=1 // pred_check
      _
    $region19: #{tpu_custom_call.1} parent=1 // pred_check_branch
      %20 = sbr.rel (0) target = $region21
    $region20: #{tpu_custom_call.1} parent=1 // pred_region
      _
    $region21: #{tpu_custom_call.1} parent=1 // pred_fallthru
      _
    %v22 = vld [vmem:[%s0] sm:$0xff]
    %v23 = vld [vmem:[%s0 + $0x8] sm:$0xff]
    %v24 = vld [vmem:[%s0 + $0x10] sm:$0xff]
    %v25 = vld [vmem:[%s0 + $0x18] sm:$0xff]
    %v26 = vld [vmem:[%s0 + $0x20] sm:$0xff]
    %v27 = vld [vmem:[%s0 + $0x28] sm:$0xff]
    %v28 = vld [vmem:[%s0 + $0x30] sm:$0xff]
    %v29 = vld [vmem:[%s0 + $0x38] sm:$0xff]
    %v30 = vld [vmem:[%s0 + $0x40] sm:$0xff]
    %v31 = vld [vmem:[%s0 + $0x48] sm:$0xff]
    %v32 = vld [vmem:[%s0 + $0x50] sm:$0xff]
    %v33 = vld [vmem:[%s0 + $0x58] sm:$0xff]
    %v34 = vld [vmem:[%s0 + $0x60] sm:$0xff]
    %v35 = vld [vmem:[%s0 + $0x68] sm:$0xff]
    %v36 = vld [vmem:[%s0 + $0x70] sm:$0xff]
    %v37 = vld [vmem:[%s0 + $0x78] sm:$0xff]
    %v38 = vld [vmem:[%s0 + $0x80] sm:$0xff]
    %v39 = vld [vmem:[%s0 + $0x88] sm:$0xff]
    %v40 = vld [vmem:[%s0 + $0x90] sm:$0xff]
    %v41 = vld [vmem:[%s0 + $0x98] sm:$0xff]
    %v42 = vld [vmem:[%s0 + $0xa0] sm:$0xff]
    %v43 = vld [vmem:[%s0 + $0xa8] sm:$0xff]
    %v44 = vld [vmem:[%s0 + $0xb0] sm:$0xff]
    %v45 = vld [vmem:[%s0 + $0xb8] sm:$0xff]
    %v46 = vld [vmem:[%s0 + $0xc0] sm:$0xff]
    %v47 = vld [vmem:[%s0 + $0xc8] sm:$0xff]
    %v48 = vld [vmem:[%s0 + $0xd0] sm:$0xff]
    %v49 = vld [vmem:[%s0 + $0xd8] sm:$0xff]
    %v50 = vld [vmem:[%s0 + $0xe0] sm:$0xff]
    %v51 = vld [vmem:[%s0 + $0xe8] sm:$0xff]
    %v52 = vld [vmem:[%s0 + $0xf0] sm:$0xff]
    %v53 = vld [vmem:[%s0 + $0xf8] sm:$0xff]
    %v54 = vld [vmem:[%s0 + $0x100] sm:$0xff]
    %v55 = vld [vmem:[%s0 + $0x108] sm:$0xff]
    %v56 = vld [vmem:[%s0 + $0x110] sm:$0xff]
    %v57 = vld [vmem:[%s0 + $0x118] sm:$0xff]
    %v58 = vld [vmem:[%s0 + $0x120] sm:$0xff]
    %v59 = vld [vmem:[%s0 + $0x128] sm:$0xff]
    %v60 = vld [vmem:[%s0 + $0x130] sm:$0xff]
    %v61 = vld [vmem:[%s0 + $0x138] sm:$0xff]
    %v62 = vld [vmem:[%s0 + $0x140] sm:$0xff]
    %v63 = vld [vmem:[%s0 + $0x148] sm:$0xff]
    %v64 = vld [vmem:[%s0 + $0x150] sm:$0xff]
    %v65 = vld [vmem:[%s0 + $0x158] sm:$0xff]
    %v66 = vld [vmem:[%s0 + $0x160] sm:$0xff]
    %v67 = vld [vmem:[%s0 + $0x168] sm:$0xff]
    %v68 = vld [vmem:[%s0 + $0x170] sm:$0xff]
    %v69 = vld [vmem:[%s0 + $0x178] sm:$0xff]
    %v70 = vld [vmem:[%s0 + $0x180] sm:$0xff]
    %v71 = vld [vmem:[%s0 + $0x188] sm:$0xff]
    %v72 = vld [vmem:[%s0 + $0x190] sm:$0xff]
    %v73 = vld [vmem:[%s0 + $0x198] sm:$0xff]
    %v74 = vld [vmem:[%s0 + $0x1a0] sm:$0xff]
    %v75 = vld [vmem:[%s0 + $0x1a8] sm:$0xff]
    %v76 = vld [vmem:[%s0 + $0x1b0] sm:$0xff]
    %v77 = vld [vmem:[%s0 + $0x1b8] sm:$0xff]
    %v78 = vld [vmem:[%s0 + $0x1c0] sm:$0xff]
    %v79 = vld [vmem:[%s0 + $0x1c8] sm:$0xff]
    %v80 = vld [vmem:[%s0 + $0x1d0] sm:$0xff]
    %v81 = vld [vmem:[%s0 + $0x1d8] sm:$0xff]
    %v82 = vld [vmem:[%s0 + $0x1e0] sm:$0xff]
    %v83 = vld [vmem:[%s0 + $0x1e8] sm:$0xff]
    %v84 = vld [vmem:[%s0 + $0x1f0] sm:$0xff]
    %v85 = vld [vmem:[%s0 + $0x1f8] sm:$0xff]
    %v86 = vmax.f32 %v22, 0.0
    %v87 = vmax.f32 %v23, 0.0
    %v88 = vmax.f32 %v24, 0.0
    %v89 = vmax.f32 %v25, 0.0
    %v90 = vmax.f32 %v26, 0.0
    %v91 = vmax.f32 %v27, 0.0
    %v92 = vmax.f32 %v28, 0.0
    %v93 = vmax.f32 %v29, 0.0
    %v94 = vmax.f32 %v30, 0.0
    %v95 = vmax.f32 %v31, 0.0
    %v96 = vmax.f32 %v32, 0.0
    %v97 = vmax.f32 %v33, 0.0
    %v98 = vmax.f32 %v34, 0.0
    %v99 = vmax.f32 %v35, 0.0
    %v100 = vmax.f32 %v36, 0.0
    %v101 = vmax.f32 %v37, 0.0
    %v102 = vmax.f32 %v38, 0.0
    %v103 = vmax.f32 %v39, 0.0
    %v104 = vmax.f32 %v40, 0.0
    %v105 = vmax.f32 %v41, 0.0
    %v106 = vmax.f32 %v42, 0.0
    %v107 = vmax.f32 %v43, 0.0
    %v108 = vmax.f32 %v44, 0.0
    %v109 = vmax.f32 %v45, 0.0
    %v110 = vmax.f32 %v46, 0.0
    %v111 = vmax.f32 %v47, 0.0
    %v112 = vmax.f32 %v48, 0.0
    %v113 = vmax.f32 %v49, 0.0
    %v114 = vmax.f32 %v50, 0.0
    %v115 = vmax.f32 %v51, 0.0
    %v116 = vmax.f32 %v52, 0.0
    %v117 = vmax.f32 %v53, 0.0
    %v118 = vmax.f32 %v54, 0.0
    %v119 = vmax.f32 %v55, 0.0
    %v120 = vmax.f32 %v56, 0.0
    %v121 = vmax.f32 %v57, 0.0
    %v122 = vmax.f32 %v58, 0.0
    %v123 = vmax.f32 %v59, 0.0
    %v124 = vmax.f32 %v60, 0.0
    %v125 = vmax.f32 %v61, 0.0
    %v126 = vmax.f32 %v62, 0.0
    %v127 = vmax.f32 %v63, 0.0
    %v128 = vmax.f32 %v64, 0.0
    %v129 = vmax.f32 %v65, 0.0
    %v130 = vmax.f32 %v66, 0.0
    %v131 = vmax.f32 %v67, 0.0
    %v132 = vmax.f32 %v68, 0.0
    %v133 = vmax.f32 %v69, 0.0
    %v134 = vmax.f32 %v70, 0.0
    %v135 = vmax.f32 %v71, 0.0
    %v136 = vmax.f32 %v72, 0.0
    %v137 = vmax.f32 %v73, 0.0
    %v138 = vmax.f32 %v74, 0.0
    %v139 = vmax.f32 %v75, 0.0
    %v140 = vmax.f32 %v76, 0.0
    %v141 = vmax.f32 %v77, 0.0
    %v142 = vmax.f32 %v78, 0.0
    %v143 = vmax.f32 %v79, 0.0
    %v144 = vmax.f32 %v80, 0.0
    %v145 = vmax.f32 %v81, 0.0
    %v146 = vmax.f32 %v82, 0.0
    %v147 = vmax.f32 %v83, 0.0
    %v148 = vmax.f32 %v84, 0.0
    %v149 = vmax.f32 %v85, 0.0
    %v150 = vpack.c.bf16 %v87, %v86
    %v151 = vpack.c.bf16 %v89, %v88
    %v152 = vpack.c.bf16 %v91, %v90
    %v153 = vpack.c.bf16 %v93, %v92
    %v154 = vpack.c.bf16 %v95, %v94
    %v155 = vpack.c.bf16 %v97, %v96
    %v156 = vpack.c.bf16 %v99, %v98
    %v157 = vpack.c.bf16 %v101, %v100
    %v158 = vpack.c.bf16 %v103, %v102
    %v159 = vpack.c.bf16 %v105, %v104
    %v160 = vpack.c.bf16 %v107, %v106
    %v161 = vpack.c.bf16 %v109, %v108
    %v162 = vpack.c.bf16 %v111, %v110
    %v163 = vpack.c.bf16 %v113, %v112
    %v164 = vpack.c.bf16 %v115, %v114
    %v165 = vpack.c.bf16 %v117, %v116
    %v166 = vpack.c.bf16 %v119, %v118
    %v167 = vpack.c.bf16 %v121, %v120
    %v168 = vpack.c.bf16 %v123, %v122
    %v169 = vpack.c.bf16 %v125, %v124
    %v170 = vpack.c.bf16 %v127, %v126
    %v171 = vpack.c.bf16 %v129, %v128
    %v172 = vpack.c.bf16 %v131, %v130
    %v173 = vpack.c.bf16 %v133, %v132
    %v174 = vpack.c.bf16 %v135, %v134
    %v175 = vpack.c.bf16 %v137, %v136
    %v176 = vpack.c.bf16 %v139, %v138
    %v177 = vpack.c.bf16 %v141, %v140
    %v178 = vpack.c.bf16 %v143, %v142
    %v179 = vpack.c.bf16 %v145, %v144
    %v180 = vpack.c.bf16 %v147, %v146
    %v181 = vpack.c.bf16 %v149, %v148
    %v182 = vld [vmem:[%s1] sm:$0xff]
    %v183 = vld [vmem:[%s1 + $0x8] sm:$0xff]
    %v184 = vld [vmem:[%s1 + $0x10] sm:$0xff]
    %v185 = vld [vmem:[%s1 + $0x18] sm:$0xff]
    %v186 = vld [vmem:[%s2] sm:$0x3]
    %v188 = vlaneseq
    %v189 = vshrl.u32 %v188, 7
    %v190 = vsub.s32 0, %v189
    %v191 = vrot.slane %v186, %v190
    %v192 = vlaneseq
    %v193 = vshrl.u32 %v192, 7
    %v194 = vsub.s32 1, %v193
    %v195 = vrot.slane %v186, %v194
    %v202 = vunpack.c.l.b16 %v182
    %v203 = vunpack.c.h.b16 %v182
    %v204 = vunpack.c.l.b16 %v183
    %v205 = vunpack.c.h.b16 %v183
    %v206 = vunpack.c.l.b16 %v184
    %v207 = vunpack.c.h.b16 %v184
    %v208 = vunpack.c.l.b16 %v185
    %v209 = vunpack.c.h.b16 %v185
    %v210 = vpack.c.b16 %v204, %v202
    %v211 = vpack.c.b16 %v205, %v203
    %v212 = vpack.c.b16 %v208, %v206
    %v213 = vpack.c.b16 %v209, %v207
    %vm218 = vcmask 261120
    %v220 = vsel %vm218, %v150, 0
    %v223 = vsel %vm218, %v151, 0
    %v226 = vsel %vm218, %v152, 0
    %v229 = vsel %vm218, %v153, 0
    %v232 = vsel %vm218, %v154, 0
    %v235 = vsel %vm218, %v155, 0
    %v238 = vsel %vm218, %v156, 0
    %v241 = vsel %vm218, %v157, 0
    %v244 = vsel %vm218, %v158, 0
    %v247 = vsel %vm218, %v159, 0
    %v250 = vsel %vm218, %v160, 0
    %v253 = vsel %vm218, %v161, 0
    %v256 = vsel %vm218, %v162, 0
    %v259 = vsel %vm218, %v163, 0
    %v262 = vsel %vm218, %v164, 0
    %v265 = vsel %vm218, %v165, 0
    %v268 = vsel %vm218, %v166, 0
    %v271 = vsel %vm218, %v167, 0
    %v274 = vsel %vm218, %v168, 0
    %v277 = vsel %vm218, %v169, 0
    %v280 = vsel %vm218, %v170, 0
    %v283 = vsel %vm218, %v171, 0
    %v286 = vsel %vm218, %v172, 0
    %v289 = vsel %vm218, %v173, 0
    %v292 = vsel %vm218, %v174, 0
    %v295 = vsel %vm218, %v175, 0
    %v298 = vsel %vm218, %v176, 0
    %v301 = vsel %vm218, %v177, 0
    %v304 = vsel %vm218, %v178, 0
    %v307 = vsel %vm218, %v179, 0
    %v310 = vsel %vm218, %v180, 0
    %v313 = vsel %vm218, %v181, 0
    %315 = vmatprep.subr.bf16.mxu0 0
    %316 = vmatpush1.bf16.msra.mxu0 0
    %317 = vmatprep.subr.bf16.mxu0 0
    %318 = vmatpush1.bf16.msra.mxu0 0
    %319 = vmatprep.subr.bf16.mxu0 0
    %320 = vmatpush1.bf16.msra.mxu0 0
    %321 = vmatprep.subr.bf16.mxu0 0
    %322 = vmatpush1.bf16.msra.mxu0 0
    %323 = vmatprep.subr.bf16.mxu0 0
    %324 = vmatpush1.bf16.msra.mxu0 0
    %325 = vmatprep.subr.bf16.mxu0 0
    %326 = vmatpush1.bf16.msra.mxu0 0
    %327 = vmatprep.subr.bf16.mxu0 %v213
    %328 = vmatpush1.bf16.msra.mxu0 %v212
    %329 = vmatprep.subr.bf16.mxu0 %v211
    %330 = vmatpush1.bf16.msra.mxu0 %v210
    %331 = vmatprep.subr.bf16.mxu0 0
    %332 = vmatpush2.bf16.msra.mxu0 0
    %333 = vmatprep.subr.bf16.mxu0 0
    %334 = vmatpush2.bf16.msra.mxu0 0
    %335 = vmatprep.subr.bf16.mxu0 0
    %336 = vmatpush2.bf16.msra.mxu0 0
    %337 = vmatprep.subr.bf16.mxu0 0
    %338 = vmatpush2.bf16.msra.mxu0 0
    %339 = vmatprep.subr.bf16.mxu0 0
    %340 = vmatpush2.bf16.msra.mxu0 0
    %341 = vmatprep.subr.bf16.mxu0 0
    %342 = vmatpush2.bf16.msra.mxu0 0
    %343 = vmatprep.subr.bf16.mxu0 0
    %344 = vmatpush2.bf16.msra.mxu0 0
    %345 = vmatprep.subr.bf16.mxu0 0
    %346 = vmatpush2.bf16.msra.mxu0 0
    %347 = vmatprep.mubr.bf16.mxu0 0
    %348 = vmatmul.mubr.bf16.gmra.mxu0 %v220
    %v349 = vpop.f32.mrf.mxu0
    %v350 = vadd.f32 %v191, %v349
    %v351 = vpop.f32.mrf.mxu0
    %v352 = vadd.f32 %v195, %v351
    %v353 = vpop.f32.mrf.mxu0
    %v354 = vadd.f32 %v191, %v353
    %v355 = vpop.f32.mrf.mxu0
    %v356 = vadd.f32 %v195, %v355
    %357 = vmatprep.mubr.bf16.mxu0 0
    %358 = vmatmul.mubr.bf16.gmra.mxu0 %v223
    %v359 = vpop.f32.mrf.mxu0
    %v360 = vadd.f32 %v191, %v359
    %v361 = vpop.f32.mrf.mxu0
    %v362 = vadd.f32 %v195, %v361
    %v363 = vpop.f32.mrf.mxu0
    %v364 = vadd.f32 %v191, %v363
    %v365 = vpop.f32.mrf.mxu0
    %v366 = vadd.f32 %v195, %v365
    %367 = vmatprep.mubr.bf16.mxu0 0
    %368 = vmatmul.mubr.bf16.gmra.mxu0 %v226
    %v369 = vpop.f32.mrf.mxu0
    %v370 = vadd.f32 %v191, %v369
    %v371 = vpop.f32.mrf.mxu0
    %v372 = vadd.f32 %v195, %v371
    %v373 = vpop.f32.mrf.mxu0
    %v374 = vadd.f32 %v191, %v373
    %v375 = vpop.f32.mrf.mxu0
    %v376 = vadd.f32 %v195, %v375
    %377 = vmatprep.mubr.bf16.mxu0 0
    %378 = vmatmul.mubr.bf16.gmra.mxu0 %v229
    %v379 = vpop.f32.mrf.mxu0
    %v380 = vadd.f32 %v191, %v379
    %v381 = vpop.f32.mrf.mxu0
    %v382 = vadd.f32 %v195, %v381
    %v383 = vpop.f32.mrf.mxu0
    %v384 = vadd.f32 %v191, %v383
    %v385 = vpop.f32.mrf.mxu0
    %v386 = vadd.f32 %v195, %v385
    %387 = vmatprep.mubr.bf16.mxu0 0
    %388 = vmatmul.mubr.bf16.gmra.mxu0 %v232
    %v389 = vpop.f32.mrf.mxu0
    %v390 = vadd.f32 %v191, %v389
    %v391 = vpop.f32.mrf.mxu0
    %v392 = vadd.f32 %v195, %v391
    %v393 = vpop.f32.mrf.mxu0
    %v394 = vadd.f32 %v191, %v393
    %v395 = vpop.f32.mrf.mxu0
    %v396 = vadd.f32 %v195, %v395
    %397 = vmatprep.mubr.bf16.mxu0 0
    %398 = vmatmul.mubr.bf16.gmra.mxu0 %v235
    %v399 = vpop.f32.mrf.mxu0
    %v400 = vadd.f32 %v191, %v399
    %v401 = vpop.f32.mrf.mxu0
    %v402 = vadd.f32 %v195, %v401
    %v403 = vpop.f32.mrf.mxu0
    %v404 = vadd.f32 %v191, %v403
    %v405 = vpop.f32.mrf.mxu0
    %v406 = vadd.f32 %v195, %v405
    %407 = vmatprep.mubr.bf16.mxu0 0
    %408 = vmatmul.mubr.bf16.gmra.mxu0 %v238
    %v409 = vpop.f32.mrf.mxu0
    %v410 = vadd.f32 %v191, %v409
    %v411 = vpop.f32.mrf.mxu0
    %v412 = vadd.f32 %v195, %v411
    %v413 = vpop.f32.mrf.mxu0
    %v414 = vadd.f32 %v191, %v413
    %v415 = vpop.f32.mrf.mxu0
    %v416 = vadd.f32 %v195, %v415
    %417 = vmatprep.mubr.bf16.mxu0 0
    %418 = vmatmul.mubr.bf16.gmra.mxu0 %v241
    %v419 = vpop.f32.mrf.mxu0
    %v420 = vadd.f32 %v191, %v419
    %v421 = vpop.f32.mrf.mxu0
    %v422 = vadd.f32 %v195, %v421
    %v423 = vpop.f32.mrf.mxu0
    %v424 = vadd.f32 %v191, %v423
    %v425 = vpop.f32.mrf.mxu0
    %v426 = vadd.f32 %v195, %v425
    %427 = vmatprep.mubr.bf16.mxu0 0
    %428 = vmatmul.mubr.bf16.gmra.mxu0 %v244
    %v429 = vpop.f32.mrf.mxu0
    %v430 = vadd.f32 %v191, %v429
    %v431 = vpop.f32.mrf.mxu0
    %v432 = vadd.f32 %v195, %v431
    %v433 = vpop.f32.mrf.mxu0
    %v434 = vadd.f32 %v191, %v433
    %v435 = vpop.f32.mrf.mxu0
    %v436 = vadd.f32 %v195, %v435
    %437 = vmatprep.mubr.bf16.mxu0 0
    %438 = vmatmul.mubr.bf16.gmra.mxu0 %v247
    %v439 = vpop.f32.mrf.mxu0
    %v440 = vadd.f32 %v191, %v439
    %v441 = vpop.f32.mrf.mxu0
    %v442 = vadd.f32 %v195, %v441
    %v443 = vpop.f32.mrf.mxu0
    %v444 = vadd.f32 %v191, %v443
    %v445 = vpop.f32.mrf.mxu0
    %v446 = vadd.f32 %v195, %v445
    %447 = vmatprep.mubr.bf16.mxu0 0
    %448 = vmatmul.mubr.bf16.gmra.mxu0 %v250
    %v449 = vpop.f32.mrf.mxu0
    %v450 = vadd.f32 %v191, %v449
    %v451 = vpop.f32.mrf.mxu0
    %v452 = vadd.f32 %v195, %v451
    %v453 = vpop.f32.mrf.mxu0
    %v454 = vadd.f32 %v191, %v453
    %v455 = vpop.f32.mrf.mxu0
    %v456 = vadd.f32 %v195, %v455
    %457 = vmatprep.mubr.bf16.mxu0 0
    %458 = vmatmul.mubr.bf16.gmra.mxu0 %v253
    %v459 = vpop.f32.mrf.mxu0
    %v460 = vadd.f32 %v191, %v459
    %v461 = vpop.f32.mrf.mxu0
    %v462 = vadd.f32 %v195, %v461
    %v463 = vpop.f32.mrf.mxu0
    %v464 = vadd.f32 %v191, %v463
    %v465 = vpop.f32.mrf.mxu0
    %v466 = vadd.f32 %v195, %v465
    %467 = vmatprep.mubr.bf16.mxu0 0
    %468 = vmatmul.mubr.bf16.gmra.mxu0 %v256
    %v469 = vpop.f32.mrf.mxu0
    %v470 = vadd.f32 %v191, %v469
    %v471 = vpop.f32.mrf.mxu0
    %v472 = vadd.f32 %v195, %v471
    %v473 = vpop.f32.mrf.mxu0
    %v474 = vadd.f32 %v191, %v473
    %v475 = vpop.f32.mrf.mxu0
    %v476 = vadd.f32 %v195, %v475
    %477 = vmatprep.mubr.bf16.mxu0 0
    %478 = vmatmul.mubr.bf16.gmra.mxu0 %v259
    %v479 = vpop.f32.mrf.mxu0
    %v480 = vadd.f32 %v191, %v479
    %v481 = vpop.f32.mrf.mxu0
    %v482 = vadd.f32 %v195, %v481
    %v483 = vpop.f32.mrf.mxu0
    %v484 = vadd.f32 %v191, %v483
    %v485 = vpop.f32.mrf.mxu0
    %v486 = vadd.f32 %v195, %v485
    %487 = vmatprep.mubr.bf16.mxu0 0
    %488 = vmatmul.mubr.bf16.gmra.mxu0 %v262
    %v489 = vpop.f32.mrf.mxu0
    %v490 = vadd.f32 %v191, %v489
    %v491 = vpop.f32.mrf.mxu0
    %v492 = vadd.f32 %v195, %v491
    %v493 = vpop.f32.mrf.mxu0
    %v494 = vadd.f32 %v191, %v493
    %v495 = vpop.f32.mrf.mxu0
    %v496 = vadd.f32 %v195, %v495
    %497 = vmatprep.mubr.bf16.mxu0 0
    %498 = vmatmul.mubr.bf16.gmra.mxu0 %v265
    %v499 = vpop.f32.mrf.mxu0
    %v500 = vadd.f32 %v191, %v499
    %v501 = vpop.f32.mrf.mxu0
    %v502 = vadd.f32 %v195, %v501
    %v503 = vpop.f32.mrf.mxu0
    %v504 = vadd.f32 %v191, %v503
    %v505 = vpop.f32.mrf.mxu0
    %v506 = vadd.f32 %v195, %v505
    %507 = vmatprep.mubr.bf16.mxu0 0
    %508 = vmatmul.mubr.bf16.gmra.mxu0 %v268
    %v509 = vpop.f32.mrf.mxu0
    %v510 = vadd.f32 %v191, %v509
    %v511 = vpop.f32.mrf.mxu0
    %v512 = vadd.f32 %v195, %v511
    %v513 = vpop.f32.mrf.mxu0
    %v514 = vadd.f32 %v191, %v513
    %v515 = vpop.f32.mrf.mxu0
    %v516 = vadd.f32 %v195, %v515
    %517 = vmatprep.mubr.bf16.mxu0 0
    %518 = vmatmul.mubr.bf16.gmra.mxu0 %v271
    %v519 = vpop.f32.mrf.mxu0
    %v520 = vadd.f32 %v191, %v519
    %v521 = vpop.f32.mrf.mxu0
    %v522 = vadd.f32 %v195, %v521
    %v523 = vpop.f32.mrf.mxu0
    %v524 = vadd.f32 %v191, %v523
    %v525 = vpop.f32.mrf.mxu0
    %v526 = vadd.f32 %v195, %v525
    %527 = vmatprep.mubr.bf16.mxu0 0
    %528 = vmatmul.mubr.bf16.gmra.mxu0 %v274
    %v529 = vpop.f32.mrf.mxu0
    %v530 = vadd.f32 %v191, %v529
    %v531 = vpop.f32.mrf.mxu0
    %v532 = vadd.f32 %v195, %v531
    %v533 = vpop.f32.mrf.mxu0
    %v534 = vadd.f32 %v191, %v533
    %v535 = vpop.f32.mrf.mxu0
    %v536 = vadd.f32 %v195, %v535
    %537 = vmatprep.mubr.bf16.mxu0 0
    %538 = vmatmul.mubr.bf16.gmra.mxu0 %v277
    %v539 = vpop.f32.mrf.mxu0
    %v540 = vadd.f32 %v191, %v539
    %v541 = vpop.f32.mrf.mxu0
    %v542 = vadd.f32 %v195, %v541
    %v543 = vpop.f32.mrf.mxu0
    %v544 = vadd.f32 %v191, %v543
    %v545 = vpop.f32.mrf.mxu0
    %v546 = vadd.f32 %v195, %v545
    %547 = vmatprep.mubr.bf16.mxu0 0
    %548 = vmatmul.mubr.bf16.gmra.mxu0 %v280
    %v549 = vpop.f32.mrf.mxu0
    %v550 = vadd.f32 %v191, %v549
    %v551 = vpop.f32.mrf.mxu0
    %v552 = vadd.f32 %v195, %v551
    %v553 = vpop.f32.mrf.mxu0
    %v554 = vadd.f32 %v191, %v553
    %v555 = vpop.f32.mrf.mxu0
    %v556 = vadd.f32 %v195, %v555
    %557 = vmatprep.mubr.bf16.mxu0 0
    %558 = vmatmul.mubr.bf16.gmra.mxu0 %v283
    %v559 = vpop.f32.mrf.mxu0
    %v560 = vadd.f32 %v191, %v559
    %v561 = vpop.f32.mrf.mxu0
    %v562 = vadd.f32 %v195, %v561
    %v563 = vpop.f32.mrf.mxu0
    %v564 = vadd.f32 %v191, %v563
    %v565 = vpop.f32.mrf.mxu0
    %v566 = vadd.f32 %v195, %v565
    %567 = vmatprep.mubr.bf16.mxu0 0
    %568 = vmatmul.mubr.bf16.gmra.mxu0 %v286
    %v569 = vpop.f32.mrf.mxu0
    %v570 = vadd.f32 %v191, %v569
    %v571 = vpop.f32.mrf.mxu0
    %v572 = vadd.f32 %v195, %v571
    %v573 = vpop.f32.mrf.mxu0
    %v574 = vadd.f32 %v191, %v573
    %v575 = vpop.f32.mrf.mxu0
    %v576 = vadd.f32 %v195, %v575
    %577 = vmatprep.mubr.bf16.mxu0 0
    %578 = vmatmul.mubr.bf16.gmra.mxu0 %v289
    %v579 = vpop.f32.mrf.mxu0
    %v580 = vadd.f32 %v191, %v579
    %v581 = vpop.f32.mrf.mxu0
    %v582 = vadd.f32 %v195, %v581
    %v583 = vpop.f32.mrf.mxu0
    %v584 = vadd.f32 %v191, %v583
    %v585 = vpop.f32.mrf.mxu0
    %v586 = vadd.f32 %v195, %v585
    %587 = vmatprep.mubr.bf16.mxu0 0
    %588 = vmatmul.mubr.bf16.gmra.mxu0 %v292
    %v589 = vpop.f32.mrf.mxu0
    %v590 = vadd.f32 %v191, %v589
    %v591 = vpop.f32.mrf.mxu0
    %v592 = vadd.f32 %v195, %v591
    %v593 = vpop.f32.mrf.mxu0
    %v594 = vadd.f32 %v191, %v593
    %v595 = vpop.f32.mrf.mxu0
    %v596 = vadd.f32 %v195, %v595
    %597 = vmatprep.mubr.bf16.mxu0 0
    %598 = vmatmul.mubr.bf16.gmra.mxu0 %v295
    %v599 = vpop.f32.mrf.mxu0
    %v600 = vadd.f32 %v191, %v599
    %v601 = vpop.f32.mrf.mxu0
    %v602 = vadd.f32 %v195, %v601
    %v603 = vpop.f32.mrf.mxu0
    %v604 = vadd.f32 %v191, %v603
    %v605 = vpop.f32.mrf.mxu0
    %v606 = vadd.f32 %v195, %v605
    %607 = vmatprep.mubr.bf16.mxu0 0
    %608 = vmatmul.mubr.bf16.gmra.mxu0 %v298
    %v609 = vpop.f32.mrf.mxu0
    %v610 = vadd.f32 %v191, %v609
    %v611 = vpop.f32.mrf.mxu0
    %v612 = vadd.f32 %v195, %v611
    %v613 = vpop.f32.mrf.mxu0
    %v614 = vadd.f32 %v191, %v613
    %v615 = vpop.f32.mrf.mxu0
    %v616 = vadd.f32 %v195, %v615
    %617 = vmatprep.mubr.bf16.mxu0 0
    %618 = vmatmul.mubr.bf16.gmra.mxu0 %v301
    %v619 = vpop.f32.mrf.mxu0
    %v620 = vadd.f32 %v191, %v619
    %v621 = vpop.f32.mrf.mxu0
    %v622 = vadd.f32 %v195, %v621
    %v623 = vpop.f32.mrf.mxu0
    %v624 = vadd.f32 %v191, %v623
    %v625 = vpop.f32.mrf.mxu0
    %v626 = vadd.f32 %v195, %v625
    %627 = vmatprep.mubr.bf16.mxu0 0
    %628 = vmatmul.mubr.bf16.gmra.mxu0 %v304
    %v629 = vpop.f32.mrf.mxu0
    %v630 = vadd.f32 %v191, %v629
    %v631 = vpop.f32.mrf.mxu0
    %v632 = vadd.f32 %v195, %v631
    %v633 = vpop.f32.mrf.mxu0
    %v634 = vadd.f32 %v191, %v633
    %v635 = vpop.f32.mrf.mxu0
    %v636 = vadd.f32 %v195, %v635
    %637 = vmatprep.mubr.bf16.mxu0 0
    %638 = vmatmul.mubr.bf16.gmra.mxu0 %v307
    %v639 = vpop.f32.mrf.mxu0
    %v640 = vadd.f32 %v191, %v639
    %v641 = vpop.f32.mrf.mxu0
    %v642 = vadd.f32 %v195, %v641
    %v643 = vpop.f32.mrf.mxu0
    %v644 = vadd.f32 %v191, %v643
    %v645 = vpop.f32.mrf.mxu0
    %v646 = vadd.f32 %v195, %v645
    %647 = vmatprep.mubr.bf16.mxu0 0
    %648 = vmatmul.mubr.bf16.gmra.mxu0 %v310
    %v649 = vpop.f32.mrf.mxu0
    %v650 = vadd.f32 %v191, %v649
    %v651 = vpop.f32.mrf.mxu0
    %v652 = vadd.f32 %v195, %v651
    %v653 = vpop.f32.mrf.mxu0
    %v654 = vadd.f32 %v191, %v653
    %v655 = vpop.f32.mrf.mxu0
    %v656 = vadd.f32 %v195, %v655
    %657 = vmatprep.mubr.bf16.mxu0 0
    %658 = vmatmul.mubr.bf16.gmra.mxu0 %v313
    %v659 = vpop.f32.mrf.mxu0
    %v660 = vadd.f32 %v191, %v659
    %v661 = vpop.f32.mrf.mxu0
    %v662 = vadd.f32 %v195, %v661
    %v663 = vpop.f32.mrf.mxu0
    %v664 = vadd.f32 %v191, %v663
    %v665 = vpop.f32.mrf.mxu0
    %v666 = vadd.f32 %v195, %v665
    %667 = vdwg.mxu0
    %v668 = vmax.f32 %v350, 0.0
    %v669 = vmax.f32 %v352, 0.0
    %v670 = vmax.f32 %v354, 0.0
    %v671 = vmax.f32 %v356, 0.0
    %v672 = vmax.f32 %v360, 0.0
    %v673 = vmax.f32 %v362, 0.0
    %v674 = vmax.f32 %v364, 0.0
    %v675 = vmax.f32 %v366, 0.0
    %v676 = vmax.f32 %v370, 0.0
    %v677 = vmax.f32 %v372, 0.0
    %v678 = vmax.f32 %v374, 0.0
    %v679 = vmax.f32 %v376, 0.0
    %v680 = vmax.f32 %v380, 0.0
    %v681 = vmax.f32 %v382, 0.0
    %v682 = vmax.f32 %v384, 0.0
    %v683 = vmax.f32 %v386, 0.0
    %v684 = vmax.f32 %v390, 0.0
    %v685 = vmax.f32 %v392, 0.0
    %v686 = vmax.f32 %v394, 0.0
    %v687 = vmax.f32 %v396, 0.0
    %v688 = vmax.f32 %v400, 0.0
    %v689 = vmax.f32 %v402, 0.0
    %v690 = vmax.f32 %v404, 0.0
    %v691 = vmax.f32 %v406, 0.0
    %v692 = vmax.f32 %v410, 0.0
    %v693 = vmax.f32 %v412, 0.0
    %v694 = vmax.f32 %v414, 0.0
    %v695 = vmax.f32 %v416, 0.0
    %v696 = vmax.f32 %v420, 0.0
    %v697 = vmax.f32 %v422, 0.0
    %v698 = vmax.f32 %v424, 0.0
    %v699 = vmax.f32 %v426, 0.0
    %v700 = vmax.f32 %v430, 0.0
    %v701 = vmax.f32 %v432, 0.0
    %v702 = vmax.f32 %v434, 0.0
    %v703 = vmax.f32 %v436, 0.0
    %v704 = vmax.f32 %v440, 0.0
    %v705 = vmax.f32 %v442, 0.0
    %v706 = vmax.f32 %v444, 0.0
    %v707 = vmax.f32 %v446, 0.0
    %v708 = vmax.f32 %v450, 0.0
    %v709 = vmax.f32 %v452, 0.0
    %v710 = vmax.f32 %v454, 0.0
    %v711 = vmax.f32 %v456, 0.0
    %v712 = vmax.f32 %v460, 0.0
    %v713 = vmax.f32 %v462, 0.0
    %v714 = vmax.f32 %v464, 0.0
    %v715 = vmax.f32 %v466, 0.0
    %v716 = vmax.f32 %v470, 0.0
    %v717 = vmax.f32 %v472, 0.0
    %v718 = vmax.f32 %v474, 0.0
    %v719 = vmax.f32 %v476, 0.0
    %v720 = vmax.f32 %v480, 0.0
    %v721 = vmax.f32 %v482, 0.0
    %v722 = vmax.f32 %v484, 0.0
    %v723 = vmax.f32 %v486, 0.0
    %v724 = vmax.f32 %v490, 0.0
    %v725 = vmax.f32 %v492, 0.0
    %v726 = vmax.f32 %v494, 0.0
    %v727 = vmax.f32 %v496, 0.0
    %v728 = vmax.f32 %v500, 0.0
    %v729 = vmax.f32 %v502, 0.0
    %v730 = vmax.f32 %v504, 0.0
    %v731 = vmax.f32 %v506, 0.0
    %v732 = vmax.f32 %v510, 0.0
    %v733 = vmax.f32 %v512, 0.0
    %v734 = vmax.f32 %v514, 0.0
    %v735 = vmax.f32 %v516, 0.0
    %v736 = vmax.f32 %v520, 0.0
    %v737 = vmax.f32 %v522, 0.0
    %v738 = vmax.f32 %v524, 0.0
    %v739 = vmax.f32 %v526, 0.0
    %v740 = vmax.f32 %v530, 0.0
    %v741 = vmax.f32 %v532, 0.0
    %v742 = vmax.f32 %v534, 0.0
    %v743 = vmax.f32 %v536, 0.0
    %v744 = vmax.f32 %v540, 0.0
    %v745 = vmax.f32 %v542, 0.0
    %v746 = vmax.f32 %v544, 0.0
    %v747 = vmax.f32 %v546, 0.0
    %v748 = vmax.f32 %v550, 0.0
    %v749 = vmax.f32 %v552, 0.0
    %v750 = vmax.f32 %v554, 0.0
    %v751 = vmax.f32 %v556, 0.0
    %v752 = vmax.f32 %v560, 0.0
    %v753 = vmax.f32 %v562, 0.0
    %v754 = vmax.f32 %v564, 0.0
    %v755 = vmax.f32 %v566, 0.0
    %v756 = vmax.f32 %v570, 0.0
    %v757 = vmax.f32 %v572, 0.0
    %v758 = vmax.f32 %v574, 0.0
    %v759 = vmax.f32 %v576, 0.0
    %v760 = vmax.f32 %v580, 0.0
    %v761 = vmax.f32 %v582, 0.0
    %v762 = vmax.f32 %v584, 0.0
    %v763 = vmax.f32 %v586, 0.0
    %v764 = vmax.f32 %v590, 0.0
    %v765 = vmax.f32 %v592, 0.0
    %v766 = vmax.f32 %v594, 0.0
    %v767 = vmax.f32 %v596, 0.0
    %v768 = vmax.f32 %v600, 0.0
    %v769 = vmax.f32 %v602, 0.0
    %v770 = vmax.f32 %v604, 0.0
    %v771 = vmax.f32 %v606, 0.0
    %v772 = vmax.f32 %v610, 0.0
    %v773 = vmax.f32 %v612, 0.0
    %v774 = vmax.f32 %v614, 0.0
    %v775 = vmax.f32 %v616, 0.0
    %v776 = vmax.f32 %v620, 0.0
    %v777 = vmax.f32 %v622, 0.0
    %v778 = vmax.f32 %v624, 0.0
    %v779 = vmax.f32 %v626, 0.0
    %v780 = vmax.f32 %v630, 0.0
    %v781 = vmax.f32 %v632, 0.0
    %v782 = vmax.f32 %v634, 0.0
    %v783 = vmax.f32 %v636, 0.0
    %v784 = vmax.f32 %v640, 0.0
    %v785 = vmax.f32 %v642, 0.0
    %v786 = vmax.f32 %v644, 0.0
    %v787 = vmax.f32 %v646, 0.0
    %v788 = vmax.f32 %v650, 0.0
    %v789 = vmax.f32 %v652, 0.0
    %v790 = vmax.f32 %v654, 0.0
    %v791 = vmax.f32 %v656, 0.0
    %v792 = vmax.f32 %v660, 0.0
    %v793 = vmax.f32 %v662, 0.0
    %v794 = vmax.f32 %v664, 0.0
    %v795 = vmax.f32 %v666, 0.0
    %v796 = vpack.c.bf16 %v670, %v668
    %v797 = vpack.c.bf16 %v671, %v669
    %v798 = vpack.c.bf16 %v674, %v672
    %v799 = vpack.c.bf16 %v675, %v673
    %v800 = vpack.c.bf16 %v678, %v676
    %v801 = vpack.c.bf16 %v679, %v677
    %v802 = vpack.c.bf16 %v682, %v680
    %v803 = vpack.c.bf16 %v683, %v681
    %v804 = vpack.c.bf16 %v686, %v684
    %v805 = vpack.c.bf16 %v687, %v685
    %v806 = vpack.c.bf16 %v690, %v688
    %v807 = vpack.c.bf16 %v691, %v689
    %v808 = vpack.c.bf16 %v694, %v692
    %v809 = vpack.c.bf16 %v695, %v693
    %v810 = vpack.c.bf16 %v698, %v696
    %v811 = vpack.c.bf16 %v699, %v697
    %v812 = vpack.c.bf16 %v702, %v700
    %v813 = vpack.c.bf16 %v703, %v701
    %v814 = vpack.c.bf16 %v706, %v704
    %v815 = vpack.c.bf16 %v707, %v705
    %v816 = vpack.c.bf16 %v710, %v708
    %v817 = vpack.c.bf16 %v711, %v709
    %v818 = vpack.c.bf16 %v714, %v712
    %v819 = vpack.c.bf16 %v715, %v713
    %v820 = vpack.c.bf16 %v718, %v716
    %v821 = vpack.c.bf16 %v719, %v717
    %v822 = vpack.c.bf16 %v722, %v720
    %v823 = vpack.c.bf16 %v723, %v721
    %v824 = vpack.c.bf16 %v726, %v724
    %v825 = vpack.c.bf16 %v727, %v725
    %v826 = vpack.c.bf16 %v730, %v728
    %v827 = vpack.c.bf16 %v731, %v729
    %v828 = vpack.c.bf16 %v734, %v732
    %v829 = vpack.c.bf16 %v735, %v733
    %v830 = vpack.c.bf16 %v738, %v736
    %v831 = vpack.c.bf16 %v739, %v737
    %v832 = vpack.c.bf16 %v742, %v740
    %v833 = vpack.c.bf16 %v743, %v741
    %v834 = vpack.c.bf16 %v746, %v744
    %v835 = vpack.c.bf16 %v747, %v745
    %v836 = vpack.c.bf16 %v750, %v748
    %v837 = vpack.c.bf16 %v751, %v749
    %v838 = vpack.c.bf16 %v754, %v752
    %v839 = vpack.c.bf16 %v755, %v753
    %v840 = vpack.c.bf16 %v758, %v756
    %v841 = vpack.c.bf16 %v759, %v757
    %v842 = vpack.c.bf16 %v762, %v760
    %v843 = vpack.c.bf16 %v763, %v761
    %v844 = vpack.c.bf16 %v766, %v764
    %v845 = vpack.c.bf16 %v767, %v765
    %v846 = vpack.c.bf16 %v770, %v768
    %v847 = vpack.c.bf16 %v771, %v769
    %v848 = vpack.c.bf16 %v774, %v772
    %v849 = vpack.c.bf16 %v775, %v773
    %v850 = vpack.c.bf16 %v778, %v776
    %v851 = vpack.c.bf16 %v779, %v777
    %v852 = vpack.c.bf16 %v782, %v780
    %v853 = vpack.c.bf16 %v783, %v781
    %v854 = vpack.c.bf16 %v786, %v784
    %v855 = vpack.c.bf16 %v787, %v785
    %v856 = vpack.c.bf16 %v790, %v788
    %v857 = vpack.c.bf16 %v791, %v789
    %v858 = vpack.c.bf16 %v794, %v792
    %v859 = vpack.c.bf16 %v795, %v793
    %v860 = vld [vmem:[%s3] sm:$0xf]
    %v861 = vld [vmem:[%s3 + $0x4] sm:$0xf]
    %v862 = vld [vmem:[%s3 + $0x8] sm:$0xf]
    %v863 = vld [vmem:[%s3 + $0xc] sm:$0xf]
    %v864 = vld [vmem:[%s3 + $0x10] sm:$0xf]
    %v865 = vld [vmem:[%s3 + $0x14] sm:$0xf]
    %v866 = vld [vmem:[%s3 + $0x18] sm:$0xf]
    %v867 = vld [vmem:[%s3 + $0x1c] sm:$0xf]
    %v868 = vld [vmem:[%s3 + $0x20] sm:$0xf]
    %v869 = vld [vmem:[%s3 + $0x24] sm:$0xf]
    %v870 = vld [vmem:[%s3 + $0x28] sm:$0xf]
    %v871 = vld [vmem:[%s3 + $0x2c] sm:$0xf]
    %v872 = vld [vmem:[%s3 + $0x30] sm:$0xf]
    %v873 = vld [vmem:[%s3 + $0x34] sm:$0xf]
    %v874 = vld [vmem:[%s3 + $0x38] sm:$0xf]
    %v875 = vld [vmem:[%s3 + $0x3c] sm:$0xf]
    %v876 = vld [vmem:[%s3 + $0x40] sm:$0xf]
    %v877 = vld [vmem:[%s3 + $0x44] sm:$0xf]
    %v878 = vld [vmem:[%s3 + $0x48] sm:$0xf]
    %v879 = vld [vmem:[%s3 + $0x4c] sm:$0xf]
    %v880 = vld [vmem:[%s3 + $0x50] sm:$0xf]
    %v881 = vld [vmem:[%s3 + $0x54] sm:$0xf]
    %v882 = vld [vmem:[%s3 + $0x58] sm:$0xf]
    %v883 = vld [vmem:[%s3 + $0x5c] sm:$0xf]
    %v884 = vld [vmem:[%s3 + $0x60] sm:$0xf]
    %v885 = vld [vmem:[%s3 + $0x64] sm:$0xf]
    %v886 = vld [vmem:[%s3 + $0x68] sm:$0xf]
    %v887 = vld [vmem:[%s3 + $0x6c] sm:$0xf]
    %v888 = vld [vmem:[%s3 + $0x70] sm:$0xf]
    %v889 = vld [vmem:[%s3 + $0x74] sm:$0xf]
    %v890 = vld [vmem:[%s3 + $0x78] sm:$0xf]
    %v891 = vld [vmem:[%s3 + $0x7c] sm:$0xf]
    %v892 = vld [vmem:[%s4] sm:$0x1]
    %v894 = vlaneseq
    %v895 = vshrl.u32 %v894, 7
    %v896 = vsub.s32 0, %v895
    %v897 = vrot.slane %v892, %v896
    %v931 = vunpack.c.l.b16 %v860
    %v932 = vunpack.c.l.b16 %v861
    %v933 = vunpack.c.l.b16 %v862
    %v934 = vunpack.c.l.b16 %v863
    %v935 = vunpack.c.l.b16 %v864
    %v936 = vunpack.c.l.b16 %v865
    %v937 = vunpack.c.l.b16 %v866
    %v938 = vunpack.c.l.b16 %v867
    %v939 = vunpack.c.l.b16 %v868
    %v940 = vunpack.c.l.b16 %v869
    %v941 = vunpack.c.l.b16 %v870
    %v942 = vunpack.c.l.b16 %v871
    %v943 = vunpack.c.l.b16 %v872
    %v944 = vunpack.c.l.b16 %v873
    %v945 = vunpack.c.l.b16 %v874
    %v946 = vunpack.c.l.b16 %v875
    %v947 = vunpack.c.l.b16 %v876
    %v948 = vunpack.c.l.b16 %v877
    %v949 = vunpack.c.l.b16 %v878
    %v950 = vunpack.c.l.b16 %v879
    %v951 = vunpack.c.l.b16 %v880
    %v952 = vunpack.c.l.b16 %v881
    %v953 = vunpack.c.l.b16 %v882
    %v954 = vunpack.c.l.b16 %v883
    %v955 = vunpack.c.l.b16 %v884
    %v956 = vunpack.c.l.b16 %v885
    %v957 = vunpack.c.l.b16 %v886
    %v958 = vunpack.c.l.b16 %v887
    %v959 = vunpack.c.l.b16 %v888
    %v960 = vunpack.c.l.b16 %v889
    %v961 = vunpack.c.l.b16 %v890
    %v962 = vunpack.c.l.b16 %v891
    %v963 = vpack.c.b16 %v932, %v931
    %v964 = vpack.c.b16 %v934, %v933
    %v965 = vpack.c.b16 %v936, %v935
    %v966 = vpack.c.b16 %v938, %v937
    %v967 = vpack.c.b16 %v940, %v939
    %v968 = vpack.c.b16 %v942, %v941
    %v969 = vpack.c.b16 %v944, %v943
    %v970 = vpack.c.b16 %v946, %v945
    %v971 = vpack.c.b16 %v948, %v947
    %v972 = vpack.c.b16 %v950, %v949
    %v973 = vpack.c.b16 %v952, %v951
    %v974 = vpack.c.b16 %v954, %v953
    %v975 = vpack.c.b16 %v956, %v955
    %v976 = vpack.c.b16 %v958, %v957
    %v977 = vpack.c.b16 %v960, %v959
    %v978 = vpack.c.b16 %v962, %v961
    %995 = vmatprep.subr.bf16.mxu0 0
    %996 = vmatpush1.bf16.msra.mxu0 %v970
    %997 = vmatprep.subr.bf16.mxu0 0
    %998 = vmatpush1.bf16.msra.mxu0 %v969
    %999 = vmatprep.subr.bf16.mxu0 0
    %1000 = vmatpush1.bf16.msra.mxu0 %v968
    %1001 = vmatprep.subr.bf16.mxu0 0
    %1002 = vmatpush1.bf16.msra.mxu0 %v967
    %1003 = vmatprep.subr.bf16.mxu0 0
    %1004 = vmatpush1.bf16.msra.mxu0 %v966
    %1005 = vmatprep.subr.bf16.mxu0 0
    %1006 = vmatpush1.bf16.msra.mxu0 %v965
    %1007 = vmatprep.subr.bf16.mxu0 0
    %1008 = vmatpush1.bf16.msra.mxu0 %v964
    %1009 = vmatprep.subr.bf16.mxu0 0
    %1010 = vmatpush1.bf16.msra.mxu0 %v963
    %1011 = vmatprep.subr.bf16.mxu0 0
    %1012 = vmatpush2.bf16.msra.mxu0 %v978
    %1013 = vmatprep.subr.bf16.mxu0 0
    %1014 = vmatpush2.bf16.msra.mxu0 %v977
    %1015 = vmatprep.subr.bf16.mxu0 0
    %1016 = vmatpush2.bf16.msra.mxu0 %v976
    %1017 = vmatprep.subr.bf16.mxu0 0
    %1018 = vmatpush2.bf16.msra.mxu0 %v975
    %1019 = vmatprep.subr.bf16.mxu0 0
    %1020 = vmatpush2.bf16.msra.mxu0 %v974
    %1021 = vmatprep.subr.bf16.mxu0 0
    %1022 = vmatpush2.bf16.msra.mxu0 %v973
    %1023 = vmatprep.subr.bf16.mxu0 0
    %1024 = vmatpush2.bf16.msra.mxu0 %v972
    %1025 = vmatprep.subr.bf16.mxu0 0
    %1026 = vmatpush2.bf16.msra.mxu0 %v971
    %1027 = vmatprep.mubr.bf16.mxu0 %v797
    %1028 = vmatmul.mubr.bf16.gmra.mxu0 %v796
    %v1029 = vpop.f32.mrf.mxu0
    %v1030 = vadd.f32 %v897, %v1029
    %v1031 = vpop.f32.mrf.mxu0
    %v1032 = vpop.f32.mrf.mxu0
    %v1033 = vadd.f32 %v897, %v1032
    %v1034 = vpop.f32.mrf.mxu0
    %1035 = vmatprep.mubr.bf16.mxu0 %v799
    %1036 = vmatmul.mubr.bf16.gmra.mxu0 %v798
    %v1037 = vpop.f32.mrf.mxu0
    %v1038 = vadd.f32 %v897, %v1037
    %v1039 = vpop.f32.mrf.mxu0
    %v1040 = vpop.f32.mrf.mxu0
    %v1041 = vadd.f32 %v897, %v1040
    %v1042 = vpop.f32.mrf.mxu0
    %1043 = vmatprep.mubr.bf16.mxu0 %v801
    %1044 = vmatmul.mubr.bf16.gmra.mxu0 %v800
    %v1045 = vpop.f32.mrf.mxu0
    %v1046 = vadd.f32 %v897, %v1045
    %v1047 = vpop.f32.mrf.mxu0
    %v1048 = vpop.f32.mrf.mxu0
    %v1049 = vadd.f32 %v897, %v1048
    %v1050 = vpop.f32.mrf.mxu0
    %1051 = vmatprep.mubr.bf16.mxu0 %v803
    %1052 = vmatmul.mubr.bf16.gmra.mxu0 %v802
    %v1053 = vpop.f32.mrf.mxu0
    %v1054 = vadd.f32 %v897, %v1053
    %v1055 = vpop.f32.mrf.mxu0
    %v1056 = vpop.f32.mrf.mxu0
    %v1057 = vadd.f32 %v897, %v1056
    %v1058 = vpop.f32.mrf.mxu0
    %1059 = vmatprep.mubr.bf16.mxu0 %v805
    %1060 = vmatmul.mubr.bf16.gmra.mxu0 %v804
    %v1061 = vpop.f32.mrf.mxu0
    %v1062 = vadd.f32 %v897, %v1061
    %v1063 = vpop.f32.mrf.mxu0
    %v1064 = vpop.f32.mrf.mxu0
    %v1065 = vadd.f32 %v897, %v1064
    %v1066 = vpop.f32.mrf.mxu0
    %1067 = vmatprep.mubr.bf16.mxu0 %v807
    %1068 = vmatmul.mubr.bf16.gmra.mxu0 %v806
    %v1069 = vpop.f32.mrf.mxu0
    %v1070 = vadd.f32 %v897, %v1069
    %v1071 = vpop.f32.mrf.mxu0
    %v1072 = vpop.f32.mrf.mxu0
    %v1073 = vadd.f32 %v897, %v1072
    %v1074 = vpop.f32.mrf.mxu0
    %1075 = vmatprep.mubr.bf16.mxu0 %v809
    %1076 = vmatmul.mubr.bf16.gmra.mxu0 %v808
    %v1077 = vpop.f32.mrf.mxu0
    %v1078 = vadd.f32 %v897, %v1077
    %v1079 = vpop.f32.mrf.mxu0
    %v1080 = vpop.f32.mrf.mxu0
    %v1081 = vadd.f32 %v897, %v1080
    %v1082 = vpop.f32.mrf.mxu0
    %1083 = vmatprep.mubr.bf16.mxu0 %v811
    %1084 = vmatmul.mubr.bf16.gmra.mxu0 %v810
    %v1085 = vpop.f32.mrf.mxu0
    %v1086 = vadd.f32 %v897, %v1085
    %v1087 = vpop.f32.mrf.mxu0
    %v1088 = vpop.f32.mrf.mxu0
    %v1089 = vadd.f32 %v897, %v1088
    %v1090 = vpop.f32.mrf.mxu0
    %1091 = vmatprep.mubr.bf16.mxu0 %v813
    %1092 = vmatmul.mubr.bf16.gmra.mxu0 %v812
    %v1093 = vpop.f32.mrf.mxu0
    %v1094 = vadd.f32 %v897, %v1093
    %v1095 = vpop.f32.mrf.mxu0
    %v1096 = vpop.f32.mrf.mxu0
    %v1097 = vadd.f32 %v897, %v1096
    %v1098 = vpop.f32.mrf.mxu0
    %1099 = vmatprep.mubr.bf16.mxu0 %v815
    %1100 = vmatmul.mubr.bf16.gmra.mxu0 %v814
    %v1101 = vpop.f32.mrf.mxu0
    %v1102 = vadd.f32 %v897, %v1101
    %v1103 = vpop.f32.mrf.mxu0
    %v1104 = vpop.f32.mrf.mxu0
    %v1105 = vadd.f32 %v897, %v1104
    %v1106 = vpop.f32.mrf.mxu0
    %1107 = vmatprep.mubr.bf16.mxu0 %v817
    %1108 = vmatmul.mubr.bf16.gmra.mxu0 %v816
    %v1109 = vpop.f32.mrf.mxu0
    %v1110 = vadd.f32 %v897, %v1109
    %v1111 = vpop.f32.mrf.mxu0
    %v1112 = vpop.f32.mrf.mxu0
    %v1113 = vadd.f32 %v897, %v1112
    %v1114 = vpop.f32.mrf.mxu0
    %1115 = vmatprep.mubr.bf16.mxu0 %v819
    %1116 = vmatmul.mubr.bf16.gmra.mxu0 %v818
    %v1117 = vpop.f32.mrf.mxu0
    %v1118 = vadd.f32 %v897, %v1117
    %v1119 = vpop.f32.mrf.mxu0
    %v1120 = vpop.f32.mrf.mxu0
    %v1121 = vadd.f32 %v897, %v1120
    %v1122 = vpop.f32.mrf.mxu0
    %1123 = vmatprep.mubr.bf16.mxu0 %v821
    %1124 = vmatmul.mubr.bf16.gmra.mxu0 %v820
    %v1125 = vpop.f32.mrf.mxu0
    %v1126 = vadd.f32 %v897, %v1125
    %v1127 = vpop.f32.mrf.mxu0
    %v1128 = vpop.f32.mrf.mxu0
    %v1129 = vadd.f32 %v897, %v1128
    %v1130 = vpop.f32.mrf.mxu0
    %1131 = vmatprep.mubr.bf16.mxu0 %v823
    %1132 = vmatmul.mubr.bf16.gmra.mxu0 %v822
    %v1133 = vpop.f32.mrf.mxu0
    %v1134 = vadd.f32 %v897, %v1133
    %v1135 = vpop.f32.mrf.mxu0
    %v1136 = vpop.f32.mrf.mxu0
    %v1137 = vadd.f32 %v897, %v1136
    %v1138 = vpop.f32.mrf.mxu0
    %1139 = vmatprep.mubr.bf16.mxu0 %v825
    %1140 = vmatmul.mubr.bf16.gmra.mxu0 %v824
    %v1141 = vpop.f32.mrf.mxu0
    %v1142 = vadd.f32 %v897, %v1141
    %v1143 = vpop.f32.mrf.mxu0
    %v1144 = vpop.f32.mrf.mxu0
    %v1145 = vadd.f32 %v897, %v1144
    %v1146 = vpop.f32.mrf.mxu0
    %1147 = vmatprep.mubr.bf16.mxu0 %v827
    %1148 = vmatmul.mubr.bf16.gmra.mxu0 %v826
    %v1149 = vpop.f32.mrf.mxu0
    %v1150 = vadd.f32 %v897, %v1149
    %v1151 = vpop.f32.mrf.mxu0
    %v1152 = vpop.f32.mrf.mxu0
    %v1153 = vadd.f32 %v897, %v1152
    %v1154 = vpop.f32.mrf.mxu0
    %1155 = vmatprep.mubr.bf16.mxu0 %v829
    %1156 = vmatmul.mubr.bf16.gmra.mxu0 %v828
    %v1157 = vpop.f32.mrf.mxu0
    %v1158 = vadd.f32 %v897, %v1157
    %v1159 = vpop.f32.mrf.mxu0
    %v1160 = vpop.f32.mrf.mxu0
    %v1161 = vadd.f32 %v897, %v1160
    %v1162 = vpop.f32.mrf.mxu0
    %1163 = vmatprep.mubr.bf16.mxu0 %v831
    %1164 = vmatmul.mubr.bf16.gmra.mxu0 %v830
    %v1165 = vpop.f32.mrf.mxu0
    %v1166 = vadd.f32 %v897, %v1165
    %v1167 = vpop.f32.mrf.mxu0
    %v1168 = vpop.f32.mrf.mxu0
    %v1169 = vadd.f32 %v897, %v1168
    %v1170 = vpop.f32.mrf.mxu0
    %1171 = vmatprep.mubr.bf16.mxu0 %v833
    %1172 = vmatmul.mubr.bf16.gmra.mxu0 %v832
    %v1173 = vpop.f32.mrf.mxu0
    %v1174 = vadd.f32 %v897, %v1173
    %v1175 = vpop.f32.mrf.mxu0
    %v1176 = vpop.f32.mrf.mxu0
    %v1177 = vadd.f32 %v897, %v1176
    %v1178 = vpop.f32.mrf.mxu0
    %1179 = vmatprep.mubr.bf16.mxu0 %v835
    %1180 = vmatmul.mubr.bf16.gmra.mxu0 %v834
    %v1181 = vpop.f32.mrf.mxu0
    %v1182 = vadd.f32 %v897, %v1181
    %v1183 = vpop.f32.mrf.mxu0
    %v1184 = vpop.f32.mrf.mxu0
    %v1185 = vadd.f32 %v897, %v1184
    %v1186 = vpop.f32.mrf.mxu0
    %1187 = vmatprep.mubr.bf16.mxu0 %v837
    %1188 = vmatmul.mubr.bf16.gmra.mxu0 %v836
    %v1189 = vpop.f32.mrf.mxu0
    %v1190 = vadd.f32 %v897, %v1189
    %v1191 = vpop.f32.mrf.mxu0
    %v1192 = vpop.f32.mrf.mxu0
    %v1193 = vadd.f32 %v897, %v1192
    %v1194 = vpop.f32.mrf.mxu0
    %1195 = vmatprep.mubr.bf16.mxu0 %v839
    %1196 = vmatmul.mubr.bf16.gmra.mxu0 %v838
    %v1197 = vpop.f32.mrf.mxu0
    %v1198 = vadd.f32 %v897, %v1197
    %v1199 = vpop.f32.mrf.mxu0
    %v1200 = vpop.f32.mrf.mxu0
    %v1201 = vadd.f32 %v897, %v1200
    %v1202 = vpop.f32.mrf.mxu0
    %1203 = vmatprep.mubr.bf16.mxu0 %v841
    %1204 = vmatmul.mubr.bf16.gmra.mxu0 %v840
    %v1205 = vpop.f32.mrf.mxu0
    %v1206 = vadd.f32 %v897, %v1205
    %v1207 = vpop.f32.mrf.mxu0
    %v1208 = vpop.f32.mrf.mxu0
    %v1209 = vadd.f32 %v897, %v1208
    %v1210 = vpop.f32.mrf.mxu0
    %1211 = vmatprep.mubr.bf16.mxu0 %v843
    %1212 = vmatmul.mubr.bf16.gmra.mxu0 %v842
    %v1213 = vpop.f32.mrf.mxu0
    %v1214 = vadd.f32 %v897, %v1213
    %v1215 = vpop.f32.mrf.mxu0
    %v1216 = vpop.f32.mrf.mxu0
    %v1217 = vadd.f32 %v897, %v1216
    %v1218 = vpop.f32.mrf.mxu0
    %1219 = vmatprep.mubr.bf16.mxu0 %v845
    %1220 = vmatmul.mubr.bf16.gmra.mxu0 %v844
    %v1221 = vpop.f32.mrf.mxu0
    %v1222 = vadd.f32 %v897, %v1221
    %v1223 = vpop.f32.mrf.mxu0
    %v1224 = vpop.f32.mrf.mxu0
    %v1225 = vadd.f32 %v897, %v1224
    %v1226 = vpop.f32.mrf.mxu0
    %1227 = vmatprep.mubr.bf16.mxu0 %v847
    %1228 = vmatmul.mubr.bf16.gmra.mxu0 %v846
    %v1229 = vpop.f32.mrf.mxu0
    %v1230 = vadd.f32 %v897, %v1229
    %v1231 = vpop.f32.mrf.mxu0
    %v1232 = vpop.f32.mrf.mxu0
    %v1233 = vadd.f32 %v897, %v1232
    %v1234 = vpop.f32.mrf.mxu0
    %1235 = vmatprep.mubr.bf16.mxu0 %v849
    %1236 = vmatmul.mubr.bf16.gmra.mxu0 %v848
    %v1237 = vpop.f32.mrf.mxu0
    %v1238 = vadd.f32 %v897, %v1237
    %v1239 = vpop.f32.mrf.mxu0
    %v1240 = vpop.f32.mrf.mxu0
    %v1241 = vadd.f32 %v897, %v1240
    %v1242 = vpop.f32.mrf.mxu0
    %1243 = vmatprep.mubr.bf16.mxu0 %v851
    %1244 = vmatmul.mubr.bf16.gmra.mxu0 %v850
    %v1245 = vpop.f32.mrf.mxu0
    %v1246 = vadd.f32 %v897, %v1245
    %v1247 = vpop.f32.mrf.mxu0
    %v1248 = vpop.f32.mrf.mxu0
    %v1249 = vadd.f32 %v897, %v1248
    %v1250 = vpop.f32.mrf.mxu0
    %1251 = vmatprep.mubr.bf16.mxu0 %v853
    %1252 = vmatmul.mubr.bf16.gmra.mxu0 %v852
    %v1253 = vpop.f32.mrf.mxu0
    %v1254 = vadd.f32 %v897, %v1253
    %v1255 = vpop.f32.mrf.mxu0
    %v1256 = vpop.f32.mrf.mxu0
    %v1257 = vadd.f32 %v897, %v1256
    %v1258 = vpop.f32.mrf.mxu0
    %1259 = vmatprep.mubr.bf16.mxu0 %v855
    %1260 = vmatmul.mubr.bf16.gmra.mxu0 %v854
    %v1261 = vpop.f32.mrf.mxu0
    %v1262 = vadd.f32 %v897, %v1261
    %v1263 = vpop.f32.mrf.mxu0
    %v1264 = vpop.f32.mrf.mxu0
    %v1265 = vadd.f32 %v897, %v1264
    %v1266 = vpop.f32.mrf.mxu0
    %1267 = vmatprep.mubr.bf16.mxu0 %v857
    %1268 = vmatmul.mubr.bf16.gmra.mxu0 %v856
    %v1269 = vpop.f32.mrf.mxu0
    %v1270 = vadd.f32 %v897, %v1269
    %v1271 = vpop.f32.mrf.mxu0
    %v1272 = vpop.f32.mrf.mxu0
    %v1273 = vadd.f32 %v897, %v1272
    %v1274 = vpop.f32.mrf.mxu0
    %1275 = vmatprep.mubr.bf16.mxu0 %v859
    %1276 = vmatmul.mubr.bf16.gmra.mxu0 %v858
    %v1277 = vpop.f32.mrf.mxu0
    %v1278 = vadd.f32 %v897, %v1277
    %v1279 = vpop.f32.mrf.mxu0
    %v1280 = vpop.f32.mrf.mxu0
    %v1281 = vadd.f32 %v897, %v1280
    %v1282 = vpop.f32.mrf.mxu0
    %1283 = vdwg.mxu0
    %v1284 = vmax.f32 %v1030, 0.0
    %v1285 = vmax.f32 %v1033, 0.0
    %v1286 = vmax.f32 %v1038, 0.0
    %v1287 = vmax.f32 %v1041, 0.0
    %v1288 = vmax.f32 %v1046, 0.0
    %v1289 = vmax.f32 %v1049, 0.0
    %v1290 = vmax.f32 %v1054, 0.0
    %v1291 = vmax.f32 %v1057, 0.0
    %v1292 = vmax.f32 %v1062, 0.0
    %v1293 = vmax.f32 %v1065, 0.0
    %v1294 = vmax.f32 %v1070, 0.0
    %v1295 = vmax.f32 %v1073, 0.0
    %v1296 = vmax.f32 %v1078, 0.0
    %v1297 = vmax.f32 %v1081, 0.0
    %v1298 = vmax.f32 %v1086, 0.0
    %v1299 = vmax.f32 %v1089, 0.0
    %v1300 = vmax.f32 %v1094, 0.0
    %v1301 = vmax.f32 %v1097, 0.0
    %v1302 = vmax.f32 %v1102, 0.0
    %v1303 = vmax.f32 %v1105, 0.0
    %v1304 = vmax.f32 %v1110, 0.0
    %v1305 = vmax.f32 %v1113, 0.0
    %v1306 = vmax.f32 %v1118, 0.0
    %v1307 = vmax.f32 %v1121, 0.0
    %v1308 = vmax.f32 %v1126, 0.0
    %v1309 = vmax.f32 %v1129, 0.0
    %v1310 = vmax.f32 %v1134, 0.0
    %v1311 = vmax.f32 %v1137, 0.0
    %v1312 = vmax.f32 %v1142, 0.0
    %v1313 = vmax.f32 %v1145, 0.0
    %v1314 = vmax.f32 %v1150, 0.0
    %v1315 = vmax.f32 %v1153, 0.0
    %v1316 = vmax.f32 %v1158, 0.0
    %v1317 = vmax.f32 %v1161, 0.0
    %v1318 = vmax.f32 %v1166, 0.0
    %v1319 = vmax.f32 %v1169, 0.0
    %v1320 = vmax.f32 %v1174, 0.0
    %v1321 = vmax.f32 %v1177, 0.0
    %v1322 = vmax.f32 %v1182, 0.0
    %v1323 = vmax.f32 %v1185, 0.0
    %v1324 = vmax.f32 %v1190, 0.0
    %v1325 = vmax.f32 %v1193, 0.0
    %v1326 = vmax.f32 %v1198, 0.0
    %v1327 = vmax.f32 %v1201, 0.0
    %v1328 = vmax.f32 %v1206, 0.0
    %v1329 = vmax.f32 %v1209, 0.0
    %v1330 = vmax.f32 %v1214, 0.0
    %v1331 = vmax.f32 %v1217, 0.0
    %v1332 = vmax.f32 %v1222, 0.0
    %v1333 = vmax.f32 %v1225, 0.0
    %v1334 = vmax.f32 %v1230, 0.0
    %v1335 = vmax.f32 %v1233, 0.0
    %v1336 = vmax.f32 %v1238, 0.0
    %v1337 = vmax.f32 %v1241, 0.0
    %v1338 = vmax.f32 %v1246, 0.0
    %v1339 = vmax.f32 %v1249, 0.0
    %v1340 = vmax.f32 %v1254, 0.0
    %v1341 = vmax.f32 %v1257, 0.0
    %v1342 = vmax.f32 %v1262, 0.0
    %v1343 = vmax.f32 %v1265, 0.0
    %v1344 = vmax.f32 %v1270, 0.0
    %v1345 = vmax.f32 %v1273, 0.0
    %v1346 = vmax.f32 %v1278, 0.0
    %v1347 = vmax.f32 %v1281, 0.0
    %1348 = vst [vmem:[#allocation2] sm:$0xff] %v1284
    %1349 = vst [vmem:[#allocation2 + $0x8] sm:$0xff] %v1285
    %1350 = vst [vmem:[#allocation2 + $0x10] sm:$0xff] %v1286
    %1351 = vst [vmem:[#allocation2 + $0x18] sm:$0xff] %v1287
    %1352 = vst [vmem:[#allocation2 + $0x20] sm:$0xff] %v1288
    %1353 = vst [vmem:[#allocation2 + $0x28] sm:$0xff] %v1289
    %1354 = vst [vmem:[#allocation2 + $0x30] sm:$0xff] %v1290
    %1355 = vst [vmem:[#allocation2 + $0x38] sm:$0xff] %v1291
    %1356 = vst [vmem:[#allocation2 + $0x40] sm:$0xff] %v1292
    %1357 = vst [vmem:[#allocation2 + $0x48] sm:$0xff] %v1293
    %1358 = vst [vmem:[#allocation2 + $0x50] sm:$0xff] %v1294
    %1359 = vst [vmem:[#allocation2 + $0x58] sm:$0xff] %v1295
    %1360 = vst [vmem:[#allocation2 + $0x60] sm:$0xff] %v1296
    %1361 = vst [vmem:[#allocation2 + $0x68] sm:$0xff] %v1297
    %1362 = vst [vmem:[#allocation2 + $0x70] sm:$0xff] %v1298
    %1363 = vst [vmem:[#allocation2 + $0x78] sm:$0xff] %v1299
    %1364 = vst [vmem:[#allocation2 + $0x80] sm:$0xff] %v1300
    %1365 = vst [vmem:[#allocation2 + $0x88] sm:$0xff] %v1301
    %1366 = vst [vmem:[#allocation2 + $0x90] sm:$0xff] %v1302
    %1367 = vst [vmem:[#allocation2 + $0x98] sm:$0xff] %v1303
    %1368 = vst [vmem:[#allocation2 + $0xa0] sm:$0xff] %v1304
    %1369 = vst [vmem:[#allocation2 + $0xa8] sm:$0xff] %v1305
    %1370 = vst [vmem:[#allocation2 + $0xb0] sm:$0xff] %v1306
    %1371 = vst [vmem:[#allocation2 + $0xb8] sm:$0xff] %v1307
    %1372 = vst [vmem:[#allocation2 + $0xc0] sm:$0xff] %v1308
    %1373 = vst [vmem:[#allocation2 + $0xc8] sm:$0xff] %v1309
    %1374 = vst [vmem:[#allocation2 + $0xd0] sm:$0xff] %v1310
    %1375 = vst [vmem:[#allocation2 + $0xd8] sm:$0xff] %v1311
    %1376 = vst [vmem:[#allocation2 + $0xe0] sm:$0xff] %v1312
    %1377 = vst [vmem:[#allocation2 + $0xe8] sm:$0xff] %v1313
    %1378 = vst [vmem:[#allocation2 + $0xf0] sm:$0xff] %v1314
    %1379 = vst [vmem:[#allocation2 + $0xf8] sm:$0xff] %v1315
    %1380 = vst [vmem:[#allocation2 + $0x100] sm:$0xff] %v1316
    %1381 = vst [vmem:[#allocation2 + $0x108] sm:$0xff] %v1317
    %1382 = vst [vmem:[#allocation2 + $0x110] sm:$0xff] %v1318
    %1383 = vst [vmem:[#allocation2 + $0x118] sm:$0xff] %v1319
    %1384 = vst [vmem:[#allocation2 + $0x120] sm:$0xff] %v1320
    %1385 = vst [vmem:[#allocation2 + $0x128] sm:$0xff] %v1321
    %1386 = vst [vmem:[#allocation2 + $0x130] sm:$0xff] %v1322
    %1387 = vst [vmem:[#allocation2 + $0x138] sm:$0xff] %v1323
    %1388 = vst [vmem:[#allocation2 + $0x140] sm:$0xff] %v1324
    %1389 = vst [vmem:[#allocation2 + $0x148] sm:$0xff] %v1325
    %1390 = vst [vmem:[#allocation2 + $0x150] sm:$0xff] %v1326
    %1391 = vst [vmem:[#allocation2 + $0x158] sm:$0xff] %v1327
    %1392 = vst [vmem:[#allocation2 + $0x160] sm:$0xff] %v1328
    %1393 = vst [vmem:[#allocation2 + $0x168] sm:$0xff] %v1329
    %1394 = vst [vmem:[#allocation2 + $0x170] sm:$0xff] %v1330
    %1395 = vst [vmem:[#allocation2 + $0x178] sm:$0xff] %v1331
    %1396 = vst [vmem:[#allocation2 + $0x180] sm:$0xff] %v1332
    %1397 = vst [vmem:[#allocation2 + $0x188] sm:$0xff] %v1333
    %1398 = vst [vmem:[#allocation2 + $0x190] sm:$0xff] %v1334
    %1399 = vst [vmem:[#allocation2 + $0x198] sm:$0xff] %v1335
    %1400 = vst [vmem:[#allocation2 + $0x1a0] sm:$0xff] %v1336
    %1401 = vst [vmem:[#allocation2 + $0x1a8] sm:$0xff] %v1337
    %1402 = vst [vmem:[#allocation2 + $0x1b0] sm:$0xff] %v1338
    %1403 = vst [vmem:[#allocation2 + $0x1b8] sm:$0xff] %v1339
    %1404 = vst [vmem:[#allocation2 + $0x1c0] sm:$0xff] %v1340
    %1405 = vst [vmem:[#allocation2 + $0x1c8] sm:$0xff] %v1341
    %1406 = vst [vmem:[#allocation2 + $0x1d0] sm:$0xff] %v1342
    %1407 = vst [vmem:[#allocation2 + $0x1d8] sm:$0xff] %v1343
    %1408 = vst [vmem:[#allocation2 + $0x1e0] sm:$0xff] %v1344
    %1409 = vst [vmem:[#allocation2 + $0x1e8] sm:$0xff] %v1345
    %1410 = vst [vmem:[#allocation2 + $0x1f0] sm:$0xff] %v1346
    %1411 = vst [vmem:[#allocation2 + $0x1f8] sm:$0xff] %v1347
    // Predicated region
    $region22: #{tpu_custom_call.1} parent=1 // pred_check
      _
    $region23: #{tpu_custom_call.1} parent=1 // pred_check_branch
      %1413 = sbr.rel (0) target = $region25
    $region24: #{tpu_custom_call.1} parent=1 // pred_region
      %s1415 = ssub.s32 8192, 8192
      %1416 = vsyncadd [#allocation3], %s1415
      %s1417 = sshll.u32 [#allocation2], 4
      %s1418 = int_to_ptr.vmem [resolvable:$true] %s1417
      %1423 = dma.vmem_to_hbm [thread:$0]  %s1418, 8192, %s5, [#allocation3], 128, 128, 8
    $region25: #{tpu_custom_call.1} parent=1 // pred_fallthru
      _
    // Predicated region
    $region26: #{tpu_custom_call.1} parent=1 // pred_check
      _
    $region27: #{tpu_custom_call.1} parent=1 // pred_check_branch
      %1425 = sbr.rel (0) target = $region29
    $region28: #{tpu_custom_call.1} parent=1 // pred_region
      %1426 = dma.done [#allocation3], 8192
    $region29: #{tpu_custom_call.1} parent=1 // pred_fallthru
      _
    %1427 = vsyncpa [#allocation3], 1

</llo_original>
